<compile_context>
chip_gen: v5e
topology: v5e:2x2
jax: 0.10.0
libtpu: 0.0.40
codegen_flags: <defaults>
</compile_context>

<pallas_src>
import math
import functools

import jax
import jax.numpy as jnp
from jax.experimental import pallas as pl
from jax.experimental.pallas import tpu as pltpu


# ----------------------------------------------------------------------------
# Fused kernel: QKV projection + per-head softmax attention + merge projection
# ----------------------------------------------------------------------------
def _mha_fused_kernel(xq_ref, xk_ref, xv_ref,
                      wq_ref, bq_ref, wk_ref, bk_ref, wv_ref, bv_ref,
                      wm_ref, bm_ref,
                      o_ref,
                      q_scr, k_scr, v_scr, ctx_scr,
                      *, num_heads, head_dim, compute_dtype):
    H, D = num_heads, head_dim
    cd = compute_dtype

    # Project K/V once per batch element (first query tile) into VMEM scratch.
    # NOTE: relies on the q-tile grid axis being sequential ("arbitrary") and
    # visiting t == 0 first for each batch element.  Do not mark axis 1 parallel.
    @pl.when(pl.program_id(1) == 0)
    def _project_kv():
        k_scr[...] = (jnp.dot(xk_ref[...], wk_ref[...],
                              preferred_element_type=jnp.float32)
                      + bk_ref[...]).astype(cd)
        v_scr[...] = (jnp.dot(xv_ref[...], wv_ref[...],
                              preferred_element_type=jnp.float32)
                      + bv_ref[...]).astype(cd)

    # Q projection for this query tile (1/sqrt(D) already folded into wq/bq).
    # Staged in VMEM so per-head operands below are cheap static *ref* slices.
    q_scr[...] = (jnp.dot(xq_ref[...], wq_ref[...],
                          preferred_element_type=jnp.float32)
                  + bq_ref[...]).astype(cd)

    # Per-head attention; each head's context is written head-concatenated into
    # ctx_scr so the merge below is one full C-deep matmul.  H is small (typ. 4)
    # -> static unroll keeps every lane slice static for Mosaic.
    for h in range(H):
        lo = h * D
        # Scores: contract head dims directly (K untransposed, NT matmul).
        s = jax.lax.dot_general(q_scr[:, lo:lo + D], k_scr[:, lo:lo + D],
                                (((1,), (1,)), ((), ())),
                                preferred_element_type=jnp.float32)   # (tq, Nkv) f32
        s = s - jnp.max(s, axis=-1, keepdims=True)
        p = jnp.exp(s)
        p = p * pl.reciprocal(jnp.sum(p, axis=-1, keepdims=True), approx=False)
        ctx_scr[:, lo:lo + D] = jnp.dot(p.astype(cd), v_scr[:, lo:lo + D],
                                        preferred_element_type=jnp.float32
                                        ).astype(cd)

    # Fused merge: single full-depth (tq, C) @ (C, C) MXU matmul + bias.
    o_ref[...] = (jnp.dot(ctx_scr[...], wm_ref[...],
                          preferred_element_type=jnp.float32)
                  + bm_ref[...]).astype(o_ref.dtype)


# ----------------------------------------------------------------------------
# Tiling / VMEM budget, re-derived per chip generation
# ----------------------------------------------------------------------------
def _select_tiling(Nq, Nkv, C, in_itemsize, cd_itemsize):
    try:
        vmem_phys = int(pltpu.get_tpu_info().vmem_capacity_bytes)
    except Exception:
        vmem_phys = 64 * 1024 * 1024          # assume v7x (smallest VMEM) if query fails
    budget = int(vmem_phys * 0.70)            # leave pipeline / compiler headroom

    def estimate(tq):
        blocks = (2 * tq * C * in_itemsize          # xq block (double-buffered)
                  + 2 * 2 * Nkv * C * in_itemsize   # xk, xv blocks
                  + 2 * 4 * C * C * in_itemsize     # 4 weight matrices
                  + 2 * tq * C * 4)                 # f32 output block
        scratch = (2 * tq * C + 2 * Nkv * C) * cd_itemsize   # q/ctx + K/V scratch
        live = 4 * tq * Nkv * 4                     # per-head f32 score/prob temps
        return blocks + scratch + live

    if Nq <= 512:
        tq = Nq                                # full dims -> always a legal block
    else:
        tq = 512
        while tq > 128 and estimate(tq) > budget:
            tq //= 2
    limit = int(min(max(estimate(tq) * 1.3, 32 * 1024 * 1024), budget))
    return tq, limit


def mha_fused_forward(xq, xk, xv, params, *, num_heads, head_dim):
    """xq: (B, Nq, C), xk/xv: (B, Nkv, C) channels-last -> (B, Nq, C) f32."""
    wq, bq, wk, bk, wv, bv, wm, bm = params
    B, Nq, C = xq.shape
    Nkv = xk.shape[1]
    cd = wq.dtype                                     # compute dtype (f32 or bf16)
    tq, vmem_limit = _select_tiling(Nq, Nkv, C,
                                    jnp.dtype(xq.dtype).itemsize,
                                    jnp.dtype(cd).itemsize)
    grid = (B, pl.cdiv(Nq, tq))

    kern = functools.partial(_mha_fused_kernel, num_heads=num_heads,
                             head_dim=head_dim, compute_dtype=cd)

    xq_spec = pl.BlockSpec((None, tq, C), lambda b, t: (b, t, 0))
    kv_spec = pl.BlockSpec((None, Nkv, C), lambda b, t: (b, 0, 0))
    w_spec = pl.BlockSpec((C, C), lambda b, t: (0, 0))
    b_spec = pl.BlockSpec((1, C), lambda b, t: (0, 0))

    # NOTE: for B == 1 on v7x (2 TensorCores) the batch-parallel axis leaves one
    # core idle; splitting the q-tile axis across cores would need per-core K/V
    # projection and is not done here.
    return pl.pallas_call(
        kern,
        out_shape=jax.ShapeDtypeStruct((B, Nq, C), jnp.float32),
        grid=grid,
        in_specs=[
            xq_spec, kv_spec, kv_spec,
            w_spec, b_spec,          # Q projection (scale folded in)
            w_spec, b_spec,          # K projection
            w_spec, b_spec,          # V projection
            w_spec, b_spec,          # merge
        ],
        out_specs=pl.BlockSpec((None, tq, C), lambda b, t: (b, t, 0)),
        scratch_shapes=[
            pltpu.VMEM((tq, C), cd),     # projected Q tile
            pltpu.VMEM((Nkv, C), cd),    # projected K (reused across q tiles)
            pltpu.VMEM((Nkv, C), cd),    # projected V
            pltpu.VMEM((tq, C), cd),     # head-concatenated context
        ],
        compiler_params=pltpu.CompilerParams(
            dimension_semantics=("parallel", "arbitrary"),
            vmem_limit_bytes=vmem_limit),
    )(xq, xk, xv, wq, bq, wk, bk, wv, bv, wm, bm)


# ----------------------------------------------------------------------------
# Module wrapper: parameter init + one-time kernel-friendly re-layout
# ----------------------------------------------------------------------------
class MultiHeadedAttentionPallas:
    def __init__(self, num_heads: int, d_model: int, key, compute_dtype=jnp.float32):
        assert d_model % num_heads == 0
        self.num_heads = num_heads
        self.dim = d_model // num_heads
        self.d_model = d_model
        self.compute_dtype = compute_dtype

        keys = jax.random.split(key, 8)
        bound = 1.0 / math.sqrt(d_model)  # Conv1d(k=1) fan_in = d_model

        def init_conv(kw, kb):
            w = jax.random.uniform(kw, (d_model, d_model), jnp.float32, -bound, bound)
            b = jax.random.uniform(kb, (d_model,), jnp.float32, -bound, bound)
            return w, b

        # Canonical (PyTorch-layout) parameters: weight (Cout, Cin), bias (Cout,),
        # torch output channel c == d_idx * num_heads + h_idx (torch .view semantics).
        self.proj = [init_conv(keys[2 * i], keys[2 * i + 1]) for i in range(3)]
        self.merge = init_conv(keys[6], keys[7])

        # Kernel-layout parameters: head-contiguous channels (c' = h*D + d),
        # transposed to (Cin, Cout) for x @ W, Q scaled by 1/sqrt(D).
        H, D, C = num_heads, self.dim, d_model
        idx = jnp.arange(C)
        perm = (idx % D) * H + (idx // D)      # kernel channel h*D+d -> torch channel d*H+h
        scale = 1.0 / math.sqrt(D)

        def proj_to_kernel(w, b, s=1.0):
            wk = (jnp.transpose(w[perm, :]) * s).astype(compute_dtype)   # (Cin, Cout')
            bk = (b[perm] * s).reshape(1, C).astype(jnp.float32)
            return wk, bk

        wq_k, bq_k = proj_to_kernel(*self.proj[0], s=scale)
        wk_k, bk_k = proj_to_kernel(*self.proj[1])
        wv_k, bv_k = proj_to_kernel(*self.proj[2])
        wm_t, bm_t = self.merge
        wm_k = jnp.transpose(wm_t)[perm, :].astype(compute_dtype)        # (Cin', Cout)
        bm_k = bm_t.reshape(1, C).astype(jnp.float32)
        self._kernel_params = (wq_k, bq_k, wk_k, bk_k, wv_k, bv_k, wm_k, bm_k)

    def __call__(self, query, key, value):
        # query: (B, d_model, Nq); key/value: (B, d_model, Nkv)  (PyTorch NCW)
        cd = self.compute_dtype
        xq = jnp.transpose(query, (0, 2, 1)).astype(cd)   # (B, Nq, C)
        xk = jnp.transpose(key, (0, 2, 1)).astype(cd)     # (B, Nkv, C)
        xv = jnp.transpose(value, (0, 2, 1)).astype(cd)
        out = mha_fused_forward(xq, xk, xv, self._kernel_params,
                                num_heads=self.num_heads, head_dim=self.dim)
        return jnp.transpose(out, (0, 2, 1))              # (B, d_model, Nq)


# ----------------------------------------------------------------------------
# Pure-JAX reference (mirrors the PyTorch module, uses canonical weights)
# ----------------------------------------------------------------------------
def reference_forward(module, q, k, v):
    def conv(x, w, b):
        return jnp.einsum('oi,bin->bon', w, x) + b[None, :, None]

    B = q.shape[0]
    H, D = module.num_heads, module.dim
    projected = []
    for (w, b), x in zip(module.proj, (q, k, v)):
        projected.append(conv(x, w, b).reshape(B, D, H, -1))
    qq, kk, vv = projected
    scores = jnp.einsum('bdhn,bdhm->bhnm', qq, kk) / (D ** 0.5)
    prob = jax.nn.softmax(scores, axis=-1)
    x = jnp.einsum('bhnm,bdhm->bdhn', prob, vv)
    wm, bm = module.merge
    return conv(x.reshape(B, D * H, -1), wm, bm)


if __name__ == "__main__":
    B, d_model, num_heads = 2, 32, 4
    Nq, Nkv = 8, 12

    root = jax.random.PRNGKey(0)
    k_params, k_q, k_k, k_v = jax.random.split(root, 4)

    query = jax.random.normal(k_q, (B, d_model, Nq), jnp.float32)
    key = jax.random.normal(k_k, (B, d_model, Nkv), jnp.float32)
    value = jax.random.normal(k_v, (B, d_model, Nkv), jnp.float32)

    # f32 compute path: tight correctness check (exact reciprocal, all-f32 math).
    module = MultiHeadedAttentionPallas(num_heads, d_model, k_params)
    out = jax.block_until_ready(module(query, key, value))
    ref = reference_forward(module, query, key, value)
    assert out.shape == (B, d_model, Nq), out.shape
    assert jnp.allclose(out, ref, atol=1e-4, rtol=1e-4), \
        float(jnp.max(jnp.abs(out - ref)))

    # bf16 compute path (MXU-friendly operands everywhere, f32 accumulation and
    # f32 softmax math): looser tolerance.
    module_bf16 = MultiHeadedAttentionPallas(num_heads, d_model, k_params,
                                             compute_dtype=jnp.bfloat16)
    out_bf16 = jax.block_until_ready(module_bf16(query, key, value))
    assert jnp.allclose(out_bf16, ref, atol=1e-1, rtol=1e-1), \
        float(jnp.max(jnp.abs(out_bf16 - ref)))

    print("KERNEL_OK")
</pallas_src>

<mosaic_0001>
module attributes {stable_mosaic.version = 11 : i64} {
  func.func @_mha_fused_kernel(%arg0: i32, %arg1: i32, %arg2: memref<1x8x32xf32, #tpu.memory_space<vmem>>, %arg3: memref<1x12x32xf32, #tpu.memory_space<vmem>>, %arg4: memref<1x12x32xf32, #tpu.memory_space<vmem>>, %arg5: memref<32x32xf32, #tpu.memory_space<vmem>>, %arg6: memref<1x32xf32, #tpu.memory_space<vmem>>, %arg7: memref<32x32xf32, #tpu.memory_space<vmem>>, %arg8: memref<1x32xf32, #tpu.memory_space<vmem>>, %arg9: memref<32x32xf32, #tpu.memory_space<vmem>>, %arg10: memref<1x32xf32, #tpu.memory_space<vmem>>, %arg11: memref<32x32xf32, #tpu.memory_space<vmem>>, %arg12: memref<1x32xf32, #tpu.memory_space<vmem>>, %arg13: memref<1x8x32xf32, #tpu.memory_space<vmem>>, %arg14: memref<8x32xf32, #tpu.memory_space<vmem>>, %arg15: memref<12x32xf32, #tpu.memory_space<vmem>>, %arg16: memref<12x32xf32, #tpu.memory_space<vmem>>, %arg17: memref<8x32xf32, #tpu.memory_space<vmem>>) attributes {dimension_semantics = [#tpu.dimension_semantics<parallel>, #tpu.dimension_semantics<arbitrary>], iteration_bounds = array<i64: 2, 1>, scalar_prefetch = 0 : i64, scratch_operands = 4 : i64, tpu.core_type = #tpu.core_type<tc>, window_params = [{transform_indices = @transform_0, window_bounds = array<i64: 1, 8, 32>}, {transform_indices = @transform_1, window_bounds = array<i64: 1, 12, 32>}, {transform_indices = @transform_2, window_bounds = array<i64: 1, 12, 32>}, {pipeline_mode = #tpu.pipeline_mode<synchronous>, transform_indices = @transform_3, window_bounds = array<i64: 32, 32>}, {pipeline_mode = #tpu.pipeline_mode<synchronous>, transform_indices = @transform_4, window_bounds = array<i64: 1, 32>}, {pipeline_mode = #tpu.pipeline_mode<synchronous>, transform_indices = @transform_5, window_bounds = array<i64: 32, 32>}, {pipeline_mode = #tpu.pipeline_mode<synchronous>, transform_indices = @transform_6, window_bounds = array<i64: 1, 32>}, {pipeline_mode = #tpu.pipeline_mode<synchronous>, transform_indices = @transform_7, window_bounds = array<i64: 32, 32>}, {pipeline_mode = #tpu.pipeline_mode<synchronous>, transform_indices = @transform_8, window_bounds = array<i64: 1, 32>}, {pipeline_mode = #tpu.pipeline_mode<synchronous>, transform_indices = @transform_9, window_bounds = array<i64: 32, 32>}, {pipeline_mode = #tpu.pipeline_mode<synchronous>, transform_indices = @transform_10, window_bounds = array<i64: 1, 32>}, {transform_indices = @transform_11, window_bounds = array<i64: 1, 8, 32>}]} {
    %c0_i32 = arith.constant 0 : i32
    %0 = arith.cmpi eq, %arg1, %c0_i32 : i32
    %1 = arith.extui %0 : i1 to i32
    %c0_i32_0 = arith.constant 0 : i32
    %2 = arith.cmpi ne, %1, %c0_i32_0 : i32
    scf.if %2 {
      %c0_64 = arith.constant 0 : index
      %c0_65 = arith.constant 0 : index
      %c0_66 = arith.constant 0 : index
      %84 = vector.load %arg3[%c0_64, %c0_65, %c0_66] : memref<1x12x32xf32, #tpu.memory_space<vmem>>, vector<1x12x32xf32>
      %85 = vector.shape_cast %84 : vector<1x12x32xf32> to vector<12x32xf32>
      %c0_67 = arith.constant 0 : index
      %c0_68 = arith.constant 0 : index
      %86 = vector.load %arg7[%c0_67, %c0_68] : memref<32x32xf32, #tpu.memory_space<vmem>>, vector<32x32xf32>
      %cst_69 = arith.constant dense<0.000000e+00> : vector<12x32xf32>
      %87 = tpu.matmul %85, %86, %cst_69 {dimension_numbers = #tpu.dot_dimension_numbers<[1], [0], [0], [1], [0, 0, 1, 1], [], []>} : vector<12x32xf32>, vector<32x32xf32>, vector<12x32xf32> -> vector<12x32xf32>
      %c0_70 = arith.constant 0 : index
      %c0_71 = arith.constant 0 : index
      %88 = vector.load %arg8[%c0_70, %c0_71] : memref<1x32xf32, #tpu.memory_space<vmem>>, vector<1x32xf32>
      %89 = vector.broadcast %88 : vector<1x32xf32> to vector<12x32xf32>
      %90 = arith.addf %87, %89 : vector<12x32xf32>
      %c0_72 = arith.constant 0 : index
      %c0_73 = arith.constant 0 : index
      %91 = vector.load %arg15[%c0_72, %c0_73] : memref<12x32xf32, #tpu.memory_space<vmem>>, vector<12x32xf32>
      tpu.vector_store %arg15[%c0_72, %c0_73], %90 {strides = array<i32>} : memref<12x32xf32, #tpu.memory_space<vmem>>, vector<12x32xf32>,
      %c0_74 = arith.constant 0 : index
      %c0_75 = arith.constant 0 : index
      %c0_76 = arith.constant 0 : index
      %92 = vector.load %arg4[%c0_74, %c0_75, %c0_76] : memref<1x12x32xf32, #tpu.memory_space<vmem>>, vector<1x12x32xf32>
      %93 = vector.shape_cast %92 : vector<1x12x32xf32> to vector<12x32xf32>
      %c0_77 = arith.constant 0 : index
      %c0_78 = arith.constant 0 : index
      %94 = vector.load %arg9[%c0_77, %c0_78] : memref<32x32xf32, #tpu.memory_space<vmem>>, vector<32x32xf32>
      %cst_79 = arith.constant dense<0.000000e+00> : vector<12x32xf32>
      %95 = tpu.matmul %93, %94, %cst_79 {dimension_numbers = #tpu.dot_dimension_numbers<[1], [0], [0], [1], [0, 0, 1, 1], [], []>} : vector<12x32xf32>, vector<32x32xf32>, vector<12x32xf32> -> vector<12x32xf32>
      %c0_80 = arith.constant 0 : index
      %c0_81 = arith.constant 0 : index
      %96 = vector.load %arg10[%c0_80, %c0_81] : memref<1x32xf32, #tpu.memory_space<vmem>>, vector<1x32xf32>
      %97 = vector.broadcast %96 : vector<1x32xf32> to vector<12x32xf32>
      %98 = arith.addf %95, %97 : vector<12x32xf32>
      %c0_82 = arith.constant 0 : index
      %c0_83 = arith.constant 0 : index
      %99 = vector.load %arg16[%c0_82, %c0_83] : memref<12x32xf32, #tpu.memory_space<vmem>>, vector<12x32xf32>
      tpu.vector_store %arg16[%c0_82, %c0_83], %98 {strides = array<i32>} : memref<12x32xf32, #tpu.memory_space<vmem>>, vector<12x32xf32>,
    } else {
    }
    %c0 = arith.constant 0 : index
    %c0_1 = arith.constant 0 : index
    %c0_2 = arith.constant 0 : index
    %3 = vector.load %arg2[%c0, %c0_1, %c0_2] : memref<1x8x32xf32, #tpu.memory_space<vmem>>, vector<1x8x32xf32>
    %4 = vector.shape_cast %3 : vector<1x8x32xf32> to vector<8x32xf32>
    %c0_3 = arith.constant 0 : index
    %c0_4 = arith.constant 0 : index
    %5 = vector.load %arg5[%c0_3, %c0_4] : memref<32x32xf32, #tpu.memory_space<vmem>>, vector<32x32xf32>
    %cst = arith.constant dense<0.000000e+00> : vector<8x32xf32>
    %6 = tpu.matmul %4, %5, %cst {dimension_numbers = #tpu.dot_dimension_numbers<[1], [0], [0], [1], [0, 0, 1, 1], [], []>} : vector<8x32xf32>, vector<32x32xf32>, vector<8x32xf32> -> vector<8x32xf32>
    %c0_5 = arith.constant 0 : index
    %c0_6 = arith.constant 0 : index
    %7 = vector.load %arg6[%c0_5, %c0_6] : memref<1x32xf32, #tpu.memory_space<vmem>>, vector<1x32xf32>
    %8 = vector.broadcast %7 : vector<1x32xf32> to vector<8x32xf32>
    %9 = arith.addf %6, %8 : vector<8x32xf32>
    %c0_7 = arith.constant 0 : index
    %c0_8 = arith.constant 0 : index
    %10 = vector.load %arg14[%c0_7, %c0_8] : memref<8x32xf32, #tpu.memory_space<vmem>>, vector<8x32xf32>
    tpu.vector_store %arg14[%c0_7, %c0_8], %9 {strides = array<i32>} : memref<8x32xf32, #tpu.memory_space<vmem>>, vector<8x32xf32>,
    %c0_9 = arith.constant 0 : index
    %c0_10 = arith.constant 0 : index
    %11 = vector.load %arg14[%c0_9, %c0_10] : memref<8x32xf32, #tpu.memory_space<vmem>>, vector<8x8xf32>
    %c0_11 = arith.constant 0 : index
    %c0_12 = arith.constant 0 : index
    %12 = vector.load %arg15[%c0_11, %c0_12] : memref<12x32xf32, #tpu.memory_space<vmem>>, vector<12x8xf32>
    %cst_13 = arith.constant dense<0.000000e+00> : vector<8x12xf32>
    %13 = tpu.matmul %11, %12, %cst_13 {dimension_numbers = #tpu.dot_dimension_numbers<[1], [1], [0], [0], [0, 0, 1, 0], [], []>} : vector<8x8xf32>, vector<12x8xf32>, vector<8x12xf32> -> vector<8x12xf32>
    %cst_14 = arith.constant dense<0xFF800000> : vector<8xf32>
    %14 = vector.multi_reduction <maximumf>, %13, %cst_14 [1] : vector<8x12xf32> to vector<8xf32>
    %15 = vector.shape_cast %14 : vector<8xf32> to vector<8x1xf32>
    %16 = vector.broadcast %15 : vector<8x1xf32> to vector<8x12xf32>
    %17 = arith.subf %13, %16 : vector<8x12xf32>
    %18 = math.exp %17 : vector<8x12xf32>
    %cst_15 = arith.constant dense<0.000000e+00> : vector<8xf32>
    %19 = vector.multi_reduction <add>, %18, %cst_15 [1] : vector<8x12xf32> to vector<8xf32>
    %20 = vector.shape_cast %19 : vector<8xf32> to vector<8x1xf32>
    %21 = tpu.reciprocal %20 : vector<8x1xf32> -> vector<8x1xf32>
    %22 = vector.broadcast %21 : vector<8x1xf32> to vector<8x12xf32>
    %23 = arith.mulf %18, %22 : vector<8x12xf32>
    %c0_16 = arith.constant 0 : index
    %c0_17 = arith.constant 0 : index
    %24 = vector.load %arg16[%c0_16, %c0_17] : memref<12x32xf32, #tpu.memory_space<vmem>>, vector<12x8xf32>
    %cst_18 = arith.constant dense<0.000000e+00> : vector<8x8xf32>
    %25 = tpu.matmul %23, %24, %cst_18 {dimension_numbers = #tpu.dot_dimension_numbers<[1], [0], [0], [1], [0, 0, 1, 1], [], []>} : vector<8x12xf32>, vector<12x8xf32>, vector<8x8xf32> -> vector<8x8xf32>
    %c0_19 = arith.constant 0 : index
    %c0_20 = arith.constant 0 : index
    %26 = vector.load %arg17[%c0_19, %c0_20] : memref<8x32xf32, #tpu.memory_space<vmem>>, vector<8x8xf32>
    tpu.vector_store %arg17[%c0_19, %c0_20], %25 {strides = array<i32>} : memref<8x32xf32, #tpu.memory_space<vmem>>, vector<8x8xf32>,
    %c0_21 = arith.constant 0 : index
    %c8 = arith.constant 8 : index
    %27 = vector.load %arg14[%c0_21, %c8] : memref<8x32xf32, #tpu.memory_space<vmem>>, vector<8x8xf32>
    %c0_22 = arith.constant 0 : index
    %c8_23 = arith.constant 8 : index
    %28 = vector.load %arg15[%c0_22, %c8_23] : memref<12x32xf32, #tpu.memory_space<vmem>>, vector<12x8xf32>
    %cst_24 = arith.constant dense<0.000000e+00> : vector<8x12xf32>
    %29 = tpu.matmul %27, %28, %cst_24 {dimension_numbers = #tpu.dot_dimension_numbers<[1], [1], [0], [0], [0, 0, 1, 0], [], []>} : vector<8x8xf32>, vector<12x8xf32>, vector<8x12xf32> -> vector<8x12xf32>
    %cst_25 = arith.constant dense<0xFF800000> : vector<8xf32>
    %30 = vector.multi_reduction <maximumf>, %29, %cst_25 [1] : vector<8x12xf32> to vector<8xf32>
    %31 = vector.shape_cast %30 : vector<8xf32> to vector<8x1xf32>
    %32 = vector.broadcast %31 : vector<8x1xf32> to vector<8x12xf32>
    %33 = arith.subf %29, %32 : vector<8x12xf32>
    %34 = math.exp %33 : vector<8x12xf32>
    %cst_26 = arith.constant dense<0.000000e+00> : vector<8xf32>
    %35 = vector.multi_reduction <add>, %34, %cst_26 [1] : vector<8x12xf32> to vector<8xf32>
    %36 = vector.shape_cast %35 : vector<8xf32> to vector<8x1xf32>
    %37 = tpu.reciprocal %36 : vector<8x1xf32> -> vector<8x1xf32>
    %38 = vector.broadcast %37 : vector<8x1xf32> to vector<8x12xf32>
    %39 = arith.mulf %34, %38 : vector<8x12xf32>
    %c0_27 = arith.constant 0 : index
    %c8_28 = arith.constant 8 : index
    %40 = vector.load %arg16[%c0_27, %c8_28] : memref<12x32xf32, #tpu.memory_space<vmem>>, vector<12x8xf32>
    %cst_29 = arith.constant dense<0.000000e+00> : vector<8x8xf32>
    %41 = tpu.matmul %39, %40, %cst_29 {dimension_numbers = #tpu.dot_dimension_numbers<[1], [0], [0], [1], [0, 0, 1, 1], [], []>} : vector<8x12xf32>, vector<12x8xf32>, vector<8x8xf32> -> vector<8x8xf32>
    %c0_30 = arith.constant 0 : index
    %c8_31 = arith.constant 8 : index
    %42 = vector.load %arg17[%c0_30, %c8_31] : memref<8x32xf32, #tpu.memory_space<vmem>>, vector<8x8xf32>
    tpu.vector_store %arg17[%c0_30, %c8_31], %41 {strides = array<i32>} : memref<8x32xf32, #tpu.memory_space<vmem>>, vector<8x8xf32>,
    %c0_32 = arith.constant 0 : index
    %c16 = arith.constant 16 : index
    %43 = vector.load %arg14[%c0_32, %c16] : memref<8x32xf32, #tpu.memory_space<vmem>>, vector<8x8xf32>
    %c0_33 = arith.constant 0 : index
    %c16_34 = arith.constant 16 : index
    %44 = vector.load %arg15[%c0_33, %c16_34] : memref<12x32xf32, #tpu.memory_space<vmem>>, vector<12x8xf32>
    %cst_35 = arith.constant dense<0.000000e+00> : vector<8x12xf32>
    %45 = tpu.matmul %43, %44, %cst_35 {dimension_numbers = #tpu.dot_dimension_numbers<[1], [1], [0], [0], [0, 0, 1, 0], [], []>} : vector<8x8xf32>, vector<12x8xf32>, vector<8x12xf32> -> vector<8x12xf32>
    %cst_36 = arith.constant dense<0xFF800000> : vector<8xf32>
    %46 = vector.multi_reduction <maximumf>, %45, %cst_36 [1] : vector<8x12xf32> to vector<8xf32>
    %47 = vector.shape_cast %46 : vector<8xf32> to vector<8x1xf32>
    %48 = vector.broadcast %47 : vector<8x1xf32> to vector<8x12xf32>
    %49 = arith.subf %45, %48 : vector<8x12xf32>
    %50 = math.exp %49 : vector<8x12xf32>
    %cst_37 = arith.constant dense<0.000000e+00> : vector<8xf32>
    %51 = vector.multi_reduction <add>, %50, %cst_37 [1] : vector<8x12xf32> to vector<8xf32>
    %52 = vector.shape_cast %51 : vector<8xf32> to vector<8x1xf32>
    %53 = tpu.reciprocal %52 : vector<8x1xf32> -> vector<8x1xf32>
    %54 = vector.broadcast %53 : vector<8x1xf32> to vector<8x12xf32>
    %55 = arith.mulf %50, %54 : vector<8x12xf32>
    %c0_38 = arith.constant 0 : index
    %c16_39 = arith.constant 16 : index
    %56 = vector.load %arg16[%c0_38, %c16_39] : memref<12x32xf32, #tpu.memory_space<vmem>>, vector<12x8xf32>
    %cst_40 = arith.constant dense<0.000000e+00> : vector<8x8xf32>
    %57 = tpu.matmul %55, %56, %cst_40 {dimension_numbers = #tpu.dot_dimension_numbers<[1], [0], [0], [1], [0, 0, 1, 1], [], []>} : vector<8x12xf32>, vector<12x8xf32>, vector<8x8xf32> -> vector<8x8xf32>
    %c0_41 = arith.constant 0 : index
    %c16_42 = arith.constant 16 : index
    %58 = vector.load %arg17[%c0_41, %c16_42] : memref<8x32xf32, #tpu.memory_space<vmem>>, vector<8x8xf32>
    tpu.vector_store %arg17[%c0_41, %c16_42], %57 {strides = array<i32>} : memref<8x32xf32, #tpu.memory_space<vmem>>, vector<8x8xf32>,
    %c0_43 = arith.constant 0 : index
    %c24 = arith.constant 24 : index
    %59 = vector.load %arg14[%c0_43, %c24] : memref<8x32xf32, #tpu.memory_space<vmem>>, vector<8x8xf32>
    %c0_44 = arith.constant 0 : index
    %c24_45 = arith.constant 24 : index
    %60 = vector.load %arg15[%c0_44, %c24_45] : memref<12x32xf32, #tpu.memory_space<vmem>>, vector<12x8xf32>
    %cst_46 = arith.constant dense<0.000000e+00> : vector<8x12xf32>
    %61 = tpu.matmul %59, %60, %cst_46 {dimension_numbers = #tpu.dot_dimension_numbers<[1], [1], [0], [0], [0, 0, 1, 0], [], []>} : vector<8x8xf32>, vector<12x8xf32>, vector<8x12xf32> -> vector<8x12xf32>
    %cst_47 = arith.constant dense<0xFF800000> : vector<8xf32>
    %62 = vector.multi_reduction <maximumf>, %61, %cst_47 [1] : vector<8x12xf32> to vector<8xf32>
    %63 = vector.shape_cast %62 : vector<8xf32> to vector<8x1xf32>
    %64 = vector.broadcast %63 : vector<8x1xf32> to vector<8x12xf32>
    %65 = arith.subf %61, %64 : vector<8x12xf32>
    %66 = math.exp %65 : vector<8x12xf32>
    %cst_48 = arith.constant dense<0.000000e+00> : vector<8xf32>
    %67 = vector.multi_reduction <add>, %66, %cst_48 [1] : vector<8x12xf32> to vector<8xf32>
    %68 = vector.shape_cast %67 : vector<8xf32> to vector<8x1xf32>
    %69 = tpu.reciprocal %68 : vector<8x1xf32> -> vector<8x1xf32>
    %70 = vector.broadcast %69 : vector<8x1xf32> to vector<8x12xf32>
    %71 = arith.mulf %66, %70 : vector<8x12xf32>
    %c0_49 = arith.constant 0 : index
    %c24_50 = arith.constant 24 : index
    %72 = vector.load %arg16[%c0_49, %c24_50] : memref<12x32xf32, #tpu.memory_space<vmem>>, vector<12x8xf32>
    %cst_51 = arith.constant dense<0.000000e+00> : vector<8x8xf32>
    %73 = tpu.matmul %71, %72, %cst_51 {dimension_numbers = #tpu.dot_dimension_numbers<[1], [0], [0], [1], [0, 0, 1, 1], [], []>} : vector<8x12xf32>, vector<12x8xf32>, vector<8x8xf32> -> vector<8x8xf32>
    %c0_52 = arith.constant 0 : index
    %c24_53 = arith.constant 24 : index
    %74 = vector.load %arg17[%c0_52, %c24_53] : memref<8x32xf32, #tpu.memory_space<vmem>>, vector<8x8xf32>
    tpu.vector_store %arg17[%c0_52, %c24_53], %73 {strides = array<i32>} : memref<8x32xf32, #tpu.memory_space<vmem>>, vector<8x8xf32>,
    %c0_54 = arith.constant 0 : index
    %c0_55 = arith.constant 0 : index
    %75 = vector.load %arg17[%c0_54, %c0_55] : memref<8x32xf32, #tpu.memory_space<vmem>>, vector<8x32xf32>
    %c0_56 = arith.constant 0 : index
    %c0_57 = arith.constant 0 : index
    %76 = vector.load %arg11[%c0_56, %c0_57] : memref<32x32xf32, #tpu.memory_space<vmem>>, vector<32x32xf32>
    %cst_58 = arith.constant dense<0.000000e+00> : vector<8x32xf32>
    %77 = tpu.matmul %75, %76, %cst_58 {dimension_numbers = #tpu.dot_dimension_numbers<[1], [0], [0], [1], [0, 0, 1, 1], [], []>} : vector<8x32xf32>, vector<32x32xf32>, vector<8x32xf32> -> vector<8x32xf32>
    %c0_59 = arith.constant 0 : index
    %c0_60 = arith.constant 0 : index
    %78 = vector.load %arg12[%c0_59, %c0_60] : memref<1x32xf32, #tpu.memory_space<vmem>>, vector<1x32xf32>
    %79 = vector.broadcast %78 : vector<1x32xf32> to vector<8x32xf32>
    %80 = arith.addf %77, %79 : vector<8x32xf32>
    %c0_61 = arith.constant 0 : index
    %c0_62 = arith.constant 0 : index
    %c0_63 = arith.constant 0 : index
    %81 = vector.load %arg13[%c0_61, %c0_62, %c0_63] : memref<1x8x32xf32, #tpu.memory_space<vmem>>, vector<1x8x32xf32>
    %82 = vector.shape_cast %81 : vector<1x8x32xf32> to vector<8x32xf32>
    %83 = vector.shape_cast %80 : vector<8x32xf32> to vector<1x8x32xf32>
    tpu.vector_store %arg13[%c0_61, %c0_62, %c0_63], %83 {strides = array<i32>} : memref<1x8x32xf32, #tpu.memory_space<vmem>>, vector<1x8x32xf32>,
    return
  }
  func.func @transform_0(%arg0: i32, %arg1: i32) -> (i32, i32, i32) {
    %c0_i32 = arith.constant 0 : i32
    %c0_i32_0 = arith.constant 0 : i32
    return %arg0, %arg1, %c0_i32 : i32, i32, i32
  }
  func.func @transform_1(%arg0: i32, %arg1: i32) -> (i32, i32, i32) {
    %c0_i32 = arith.constant 0 : i32
    %c0_i32_0 = arith.constant 0 : i32
    %c0_i32_1 = arith.constant 0 : i32
    return %arg0, %c0_i32, %c0_i32_0 : i32, i32, i32
  }
  func.func @transform_2(%arg0: i32, %arg1: i32) -> (i32, i32, i32) {
    %c0_i32 = arith.constant 0 : i32
    %c0_i32_0 = arith.constant 0 : i32
    %c0_i32_1 = arith.constant 0 : i32
    return %arg0, %c0_i32, %c0_i32_0 : i32, i32, i32
  }
  func.func @transform_3(%arg0: i32, %arg1: i32) -> (i32, i32) {
    %c0_i32 = arith.constant 0 : i32
    %c0_i32_0 = arith.constant 0 : i32
    %c0_i32_1 = arith.constant 0 : i32
    return %c0_i32, %c0_i32_0 : i32, i32
  }
  func.func @transform_4(%arg0: i32, %arg1: i32) -> (i32, i32) {
    %c0_i32 = arith.constant 0 : i32
    %c0_i32_0 = arith.constant 0 : i32
    %c0_i32_1 = arith.constant 0 : i32
    return %c0_i32, %c0_i32_0 : i32, i32
  }
  func.func @transform_5(%arg0: i32, %arg1: i32) -> (i32, i32) {
    %c0_i32 = arith.constant 0 : i32
    %c0_i32_0 = arith.constant 0 : i32
    %c0_i32_1 = arith.constant 0 : i32
    return %c0_i32, %c0_i32_0 : i32, i32
  }
  func.func @transform_6(%arg0: i32, %arg1: i32) -> (i32, i32) {
    %c0_i32 = arith.constant 0 : i32
    %c0_i32_0 = arith.constant 0 : i32
    %c0_i32_1 = arith.constant 0 : i32
    return %c0_i32, %c0_i32_0 : i32, i32
  }
  func.func @transform_7(%arg0: i32, %arg1: i32) -> (i32, i32) {
    %c0_i32 = arith.constant 0 : i32
    %c0_i32_0 = arith.constant 0 : i32
    %c0_i32_1 = arith.constant 0 : i32
    return %c0_i32, %c0_i32_0 : i32, i32
  }
  func.func @transform_8(%arg0: i32, %arg1: i32) -> (i32, i32) {
    %c0_i32 = arith.constant 0 : i32
    %c0_i32_0 = arith.constant 0 : i32
    %c0_i32_1 = arith.constant 0 : i32
    return %c0_i32, %c0_i32_0 : i32, i32
  }
  func.func @transform_9(%arg0: i32, %arg1: i32) -> (i32, i32) {
    %c0_i32 = arith.constant 0 : i32
    %c0_i32_0 = arith.constant 0 : i32
    %c0_i32_1 = arith.constant 0 : i32
    return %c0_i32, %c0_i32_0 : i32, i32
  }
  func.func @transform_10(%arg0: i32, %arg1: i32) -> (i32, i32) {
    %c0_i32 = arith.constant 0 : i32
    %c0_i32_0 = arith.constant 0 : i32
    %c0_i32_1 = arith.constant 0 : i32
    return %c0_i32, %c0_i32_0 : i32, i32
  }
  func.func @transform_11(%arg0: i32, %arg1: i32) -> (i32, i32, i32) {
    %c0_i32 = arith.constant 0 : i32
    %c0_i32_0 = arith.constant 0 : i32
    return %arg0, %arg1, %c0_i32 : i32, i32, i32
  }
}

</mosaic_0001>

<llo_original>
// kernel: tpu_custom_call.1
$region0: #{tpu_custom_call.1}
  #allocation0 [shape = 'u32[]', space=smem, size = 0x4, offset = 0x4, fixed_abs, tag = 'smem constant byte address 0x4 - core index']
  #allocation1 [shape = 'u32[72,128]{1,0:T(1,128)}', space=vmem, size = 0x9000, scoped, tag = 'internal scratch']
  #allocation2 [shape = 'f32[8,32]{1,0:T(8,128)}', space=vmem, size = 0x1000, scoped, tag = 'scratch operand']
  #allocation3 [shape = 'f32[12,32]{1,0:T(8,128)}', space=vmem, size = 0x2000, scoped, tag = 'scratch operand']
  #allocation4 [shape = 'f32[12,32]{1,0:T(8,128)}', space=vmem, size = 0x2000, scoped, tag = 'scratch operand']
  #allocation5 [shape = 'f32[8,32]{1,0:T(8,128)}', space=vmem, size = 0x1000, scoped, tag = 'scratch operand']
  %s0 = inlined_call_operand.vmem [shape: f32[2,8,32], index: 0, kind: input, shape index: {}]
  %s1 = inlined_call_operand.vmem [shape: f32[2,12,32], index: 1, kind: input, shape index: {}]
  %s2 = inlined_call_operand.vmem [shape: f32[2,12,32], index: 2, kind: input, shape index: {}]
  %s3 = inlined_call_operand.vmem [shape: f32[32,32], index: 3, kind: input, shape index: {}]
  %s4 = inlined_call_operand.vmem [shape: f32[1,32], index: 4, kind: input, shape index: {}]
  %s5 = inlined_call_operand.vmem [shape: f32[32,32], index: 5, kind: input, shape index: {}]
  %s6 = inlined_call_operand.vmem [shape: f32[1,32], index: 6, kind: input, shape index: {}]
  %s7 = inlined_call_operand.hbm [shape: f32[32,32], index: 7, kind: input, shape index: {}]
  %s8 = inlined_call_operand.vmem [shape: f32[1,32], index: 8, kind: input, shape index: {}]
  %s9 = inlined_call_operand.hbm [shape: f32[32,32], index: 9, kind: input, shape index: {}]
  %s10 = inlined_call_operand.vmem [shape: f32[1,32], index: 10, kind: input, shape index: {}]
  %s11 = inlined_call_operand.hbm [shape: f32[2,8,32], index: 11, kind: output, shape index: {}]
  %s12 = sld [smem:[#allocation0]]
  $region89: #{tpu_custom_call.1} parent=0
    _
  %s14 = ssub.s32 1, %s12
  %s15 = scalar_select 0, %s14, %s12
  $region1: #{tpu_custom_call.1} parent=0
    #allocation6 [shape = 'u8[16384]{0}', space=vmem, size = 0x4000, scoped, tag = 'input window, operand 7, single buffered']
    #allocation7 [shape = 's32[2]{0}', space=sflag, size = 0x8, scoped, tag = 'scoped memory for tpu_custom_call.1']
    #allocation8 [shape = 's32[2]{0}', space=sflag, size = 0x8, scoped, tag = 'scoped memory for tpu_custom_call.1']
    #allocation9 [shape = 'u8[16384]{0}', space=vmem, size = 0x4000, scoped, tag = 'input window, operand 9, single buffered']
    #allocation10 [shape = 's32[1]{0}', space=sflag, size = 0x4, scoped, tag = 'scoped memory for tpu_custom_call.1']
    #allocation11 [shape = 'u8[8192]{0}', space=vmem, size = 0x2000, scoped, tag = 'output window, operand 0']
    %16 = vsyncpa [#allocation7], 0
    %17 = vsyncpa [#allocation10], 0
    %18 = vsyncpa [#allocation8], 0
    %s19 = scalar_lea.sflag [#allocation8], 1
    %20 = vsyncpa %s19, 0
    loop: start=0, step=1, limit=4
    $region2: #{tpu_custom_call.1} parent=1 // loop_pre_header
      _
    $region3: #{tpu_custom_call.1} parent=1 // loop_header
      %s22 = sphi 0, %s26
      %p23 = scmp.ge.s32.totalorder %s22, 4
      %s29 = sphi 0, %s41
      %s30 = sphi 0, %s37
      %s31 = sphi 0, %s29
      %s32 = sphi 0, %s30
      %s33 = sphi 0, %s31
      %s34 = sphi 0, %s32
      %s46 = sphi 0, %s48
      %s49 = sphi 0, %s46
      %s50 = sphi 0, %s49
      %s66 = sphi 0, %s50
      %s72 = sphi 0, %s74
      %s75 = sphi 0, %s72
      %s76 = sphi 0, %s75
      %s92 = sphi 0, %s76
      %s98 = sphi 0, %s100
      %s101 = sphi 0, %s98
      %s102 = sphi 0, %s101
      %s118 = sphi 0, %s102
      %s122 = sphi 0, %s122
      %s124 = sphi 0, %s122
      %s125 = sphi 0, %s124
      %s139 = sphi 0, %s125
      %s143 = sphi 0, %s143
      %s145 = sphi 0, %s143
      %s146 = sphi 0, %s145
      %s160 = sphi 0, %s146
      %s164 = sphi 0, %s164
      %s166 = sphi 0, %s164
      %s167 = sphi 0, %s166
      %s181 = sphi 0, %s167
      %s185 = sphi 0, %s185
      %s187 = sphi 0, %s185
      %s188 = sphi 0, %s187
      %s202 = sphi 0, %s188
      %s206 = sphi 0, %s206
      %s208 = sphi 0, %s206
      %s209 = sphi 0, %s208
      %s223 = sphi 0, %s209
      %s227 = sphi 0, %s227
      %s229 = sphi 0, %s227
      %s230 = sphi 0, %s229
      %s244 = sphi 0, %s230
      %s248 = sphi 0, %s248
      %s250 = sphi 0, %s248
      %s251 = sphi 0, %s250
      %s265 = sphi 0, %s251
      %s269 = sphi 0, %s269
      %s271 = sphi 0, %s269
      %s272 = sphi 0, %s271
      %s286 = sphi 0, %s272
      %s294 = sphi 0, %s296
      %s297 = sphi 0, %s294
      %s298 = sphi 0, %s297
      %s314 = sphi 0, %s298
    $region4: #{tpu_custom_call.1} parent=1 // loop_header_branch
      %25 = sbr.rel (%p23) target = $region8
    $region5: #{tpu_custom_call.1} parent=1 // loop_body
      %s27 = ssub.s32 %s22, 1
      %s28 = ssub.s32 %s22, 2
      %s35 = sadd.s32 1, %s30
      %p36 = scmp.ge.s32.totalorder %s35, 1
      %s37 = scalar_select %p36, 0, %s35
      %s38 = sadd.s32 1, %s29
      %s39 = scalar_select %p36, %s38, %s29
      %p40 = scmp.ge.s32.totalorder %s39, 2
      %s41 = scalar_select %p40, 0, %s39
      %s42 = ssub.s32 %s29, %s41
      %s43 = ssub.s32 %s30, %s37
      %s44 = sor.u32 %s42, %s43
      %p45 = scmp.eq.s32.totalorder %s44, 0
      %s47 = sadd.s32 %s46, 1
      %s48 = scalar_select %p45, %s46, %s47
      %p51 = pneg %p45
      %p52 = scmp.eq.s32.totalorder %s22, 1
      %p53 = por %p51, %p52
      %p54 = scmp.ne.s32.totalorder %s46, %s49
      %p55 = scmp.eq.s32.totalorder %s22, 0
      %p56 = por %p54, %p55
      %p57 = scmp.ne.s32.totalorder %s46, %s49
      %p58 = scmp.eq.s32.totalorder %s27, 1
      %p59 = por %p57, %p58
      %p60 = scmp.ne.s32.totalorder %s49, %s50
      %p61 = scmp.eq.s32.totalorder %s27, 0
      %p62 = por %p60, %p61
      %p63 = scmp.ne.s32.totalorder %s49, %s50
      %p64 = scmp.eq.s32.totalorder %s28, 1
      %p65 = por %p63, %p64
      %p67 = scmp.ne.s32.totalorder %s50, %s66
      %p68 = scmp.eq.s32.totalorder %s28, 0
      %p69 = por %p67, %p68
      %s70 = ssub.s32 %s29, %s41
      %p71 = scmp.eq.s32.totalorder %s70, 0
      %s73 = sadd.s32 %s72, 1
      %s74 = scalar_select %p71, %s72, %s73
      %p77 = pneg %p71
      %p78 = scmp.eq.s32.totalorder %s22, 1
      %p79 = por %p77, %p78
      %p80 = scmp.ne.s32.totalorder %s72, %s75
      %p81 = scmp.eq.s32.totalorder %s22, 0
      %p82 = por %p80, %p81
      %p83 = scmp.ne.s32.totalorder %s72, %s75
      %p84 = scmp.eq.s32.totalorder %s27, 1
      %p85 = por %p83, %p84
      %p86 = scmp.ne.s32.totalorder %s75, %s76
      %p87 = scmp.eq.s32.totalorder %s27, 0
      %p88 = por %p86, %p87
      %p89 = scmp.ne.s32.totalorder %s75, %s76
      %p90 = scmp.eq.s32.totalorder %s28, 1
      %p91 = por %p89, %p90
      %p93 = scmp.ne.s32.totalorder %s76, %s92
      %p94 = scmp.eq.s32.totalorder %s28, 0
      %p95 = por %p93, %p94
      %s96 = ssub.s32 %s29, %s41
      %p97 = scmp.eq.s32.totalorder %s96, 0
      %s99 = sadd.s32 %s98, 1
      %s100 = scalar_select %p97, %s98, %s99
      %p103 = pneg %p97
      %p104 = scmp.eq.s32.totalorder %s22, 1
      %p105 = por %p103, %p104
      %p106 = scmp.ne.s32.totalorder %s98, %s101
      %p107 = scmp.eq.s32.totalorder %s22, 0
      %p108 = por %p106, %p107
      %p109 = scmp.ne.s32.totalorder %s98, %s101
      %p110 = scmp.eq.s32.totalorder %s27, 1
      %p111 = por %p109, %p110
      %p112 = scmp.ne.s32.totalorder %s101, %s102
      %p113 = scmp.eq.s32.totalorder %s27, 0
      %p114 = por %p112, %p113
      %p115 = scmp.ne.s32.totalorder %s101, %s102
      %p116 = scmp.eq.s32.totalorder %s28, 1
      %p117 = por %p115, %p116
      %p119 = scmp.ne.s32.totalorder %s102, %s118
      %p120 = scmp.eq.s32.totalorder %s28, 0
      %p121 = por %p119, %p120
      %s123 = sadd.s32 %s122, 1
      %p126 = scmp.eq.s32.totalorder %s22, 1
      %p127 = scmp.ne.s32.totalorder %s122, %s124
      %p128 = scmp.eq.s32.totalorder %s22, 0
      %p129 = por %p127, %p128
      %p130 = scmp.ne.s32.totalorder %s122, %s124
      %p131 = scmp.eq.s32.totalorder %s27, 1
      %p132 = por %p130, %p131
      %p133 = scmp.ne.s32.totalorder %s124, %s125
      %p134 = scmp.eq.s32.totalorder %s27, 0
      %p135 = por %p133, %p134
      %p136 = scmp.ne.s32.totalorder %s124, %s125
      %p137 = scmp.eq.s32.totalorder %s28, 1
      %p138 = por %p136, %p137
      %p140 = scmp.ne.s32.totalorder %s125, %s139
      %p141 = scmp.eq.s32.totalorder %s28, 0
      %p142 = por %p140, %p141
      %s144 = sadd.s32 %s143, 1
      %p147 = scmp.eq.s32.totalorder %s22, 1
      %p148 = scmp.ne.s32.totalorder %s143, %s145
      %p149 = scmp.eq.s32.totalorder %s22, 0
      %p150 = por %p148, %p149
      %p151 = scmp.ne.s32.totalorder %s143, %s145
      %p152 = scmp.eq.s32.totalorder %s27, 1
      %p153 = por %p151, %p152
      %p154 = scmp.ne.s32.totalorder %s145, %s146
      %p155 = scmp.eq.s32.totalorder %s27, 0
      %p156 = por %p154, %p155
      %p157 = scmp.ne.s32.totalorder %s145, %s146
      %p158 = scmp.eq.s32.totalorder %s28, 1
      %p159 = por %p157, %p158
      %p161 = scmp.ne.s32.totalorder %s146, %s160
      %p162 = scmp.eq.s32.totalorder %s28, 0
      %p163 = por %p161, %p162
      %s165 = sadd.s32 %s164, 1
      %p168 = scmp.eq.s32.totalorder %s22, 1
      %p169 = scmp.ne.s32.totalorder %s164, %s166
      %p170 = scmp.eq.s32.totalorder %s22, 0
      %p171 = por %p169, %p170
      %p172 = scmp.ne.s32.totalorder %s164, %s166
      %p173 = scmp.eq.s32.totalorder %s27, 1
      %p174 = por %p172, %p173
      %p175 = scmp.ne.s32.totalorder %s166, %s167
      %p176 = scmp.eq.s32.totalorder %s27, 0
      %p177 = por %p175, %p176
      %p178 = scmp.ne.s32.totalorder %s166, %s167
      %p179 = scmp.eq.s32.totalorder %s28, 1
      %p180 = por %p178, %p179
      %p182 = scmp.ne.s32.totalorder %s167, %s181
      %p183 = scmp.eq.s32.totalorder %s28, 0
      %p184 = por %p182, %p183
      %s186 = sadd.s32 %s185, 1
      %p189 = scmp.eq.s32.totalorder %s22, 1
      %p190 = scmp.ne.s32.totalorder %s185, %s187
      %p191 = scmp.eq.s32.totalorder %s22, 0
      %p192 = por %p190, %p191
      %p193 = scmp.ne.s32.totalorder %s185, %s187
      %p194 = scmp.eq.s32.totalorder %s27, 1
      %p195 = por %p193, %p194
      %p196 = scmp.ne.s32.totalorder %s187, %s188
      %p197 = scmp.eq.s32.totalorder %s27, 0
      %p198 = por %p196, %p197
      %p199 = scmp.ne.s32.totalorder %s187, %s188
      %p200 = scmp.eq.s32.totalorder %s28, 1
      %p201 = por %p199, %p200
      %p203 = scmp.ne.s32.totalorder %s188, %s202
      %p204 = scmp.eq.s32.totalorder %s28, 0
      %p205 = por %p203, %p204
      %s207 = sadd.s32 %s206, 1
      %p210 = scmp.eq.s32.totalorder %s22, 1
      %p211 = scmp.ne.s32.totalorder %s206, %s208
      %p212 = scmp.eq.s32.totalorder %s22, 0
      %p213 = por %p211, %p212
      %p214 = scmp.ne.s32.totalorder %s206, %s208
      %p215 = scmp.eq.s32.totalorder %s27, 1
      %p216 = por %p214, %p215
      %p217 = scmp.ne.s32.totalorder %s208, %s209
      %p218 = scmp.eq.s32.totalorder %s27, 0
      %p219 = por %p217, %p218
      %p220 = scmp.ne.s32.totalorder %s208, %s209
      %p221 = scmp.eq.s32.totalorder %s28, 1
      %p222 = por %p220, %p221
      %p224 = scmp.ne.s32.totalorder %s209, %s223
      %p225 = scmp.eq.s32.totalorder %s28, 0
      %p226 = por %p224, %p225
      %s228 = sadd.s32 %s227, 1
      %p231 = scmp.eq.s32.totalorder %s22, 1
      %p232 = scmp.ne.s32.totalorder %s227, %s229
      %p233 = scmp.eq.s32.totalorder %s22, 0
      %p234 = por %p232, %p233
      %p235 = scmp.ne.s32.totalorder %s227, %s229
      %p236 = scmp.eq.s32.totalorder %s27, 1
      %p237 = por %p235, %p236
      %p238 = scmp.ne.s32.totalorder %s229, %s230
      %p239 = scmp.eq.s32.totalorder %s27, 0
      %p240 = por %p238, %p239
      %p241 = scmp.ne.s32.totalorder %s229, %s230
      %p242 = scmp.eq.s32.totalorder %s28, 1
      %p243 = por %p241, %p242
      %p245 = scmp.ne.s32.totalorder %s230, %s244
      %p246 = scmp.eq.s32.totalorder %s28, 0
      %p247 = por %p245, %p246
      %s249 = sadd.s32 %s248, 1
      %p252 = scmp.eq.s32.totalorder %s22, 1
      %p253 = scmp.ne.s32.totalorder %s248, %s250
      %p254 = scmp.eq.s32.totalorder %s22, 0
      %p255 = por %p253, %p254
      %p256 = scmp.ne.s32.totalorder %s248, %s250
      %p257 = scmp.eq.s32.totalorder %s27, 1
      %p258 = por %p256, %p257
      %p259 = scmp.ne.s32.totalorder %s250, %s251
      %p260 = scmp.eq.s32.totalorder %s27, 0
      %p261 = por %p259, %p260
      %p262 = scmp.ne.s32.totalorder %s250, %s251
      %p263 = scmp.eq.s32.totalorder %s28, 1
      %p264 = por %p262, %p263
      %p266 = scmp.ne.s32.totalorder %s251, %s265
      %p267 = scmp.eq.s32.totalorder %s28, 0
      %p268 = por %p266, %p267
      %s270 = sadd.s32 %s269, 1
      %p273 = scmp.eq.s32.totalorder %s22, 1
      %p274 = scmp.ne.s32.totalorder %s269, %s271
      %p275 = scmp.eq.s32.totalorder %s22, 0
      %p276 = por %p274, %p275
      %p277 = scmp.ne.s32.totalorder %s269, %s271
      %p278 = scmp.eq.s32.totalorder %s27, 1
      %p279 = por %p277, %p278
      %p280 = scmp.ne.s32.totalorder %s271, %s272
      %p281 = scmp.eq.s32.totalorder %s27, 0
      %p282 = por %p280, %p281
      %p283 = scmp.ne.s32.totalorder %s271, %s272
      %p284 = scmp.eq.s32.totalorder %s28, 1
      %p285 = por %p283, %p284
      %p287 = scmp.ne.s32.totalorder %s272, %s286
      %p288 = scmp.eq.s32.totalorder %s28, 0
      %p289 = por %p287, %p288
      %s290 = ssub.s32 %s29, %s41
      %s291 = ssub.s32 %s30, %s37
      %s292 = sor.u32 %s290, %s291
      %p293 = scmp.eq.s32.totalorder %s292, 0
      %s295 = sadd.s32 %s294, 1
      %s296 = scalar_select %p293, %s294, %s295
      %p299 = pneg %p293
      %p300 = scmp.eq.s32.totalorder %s22, 1
      %p301 = por %p299, %p300
      %p302 = scmp.ne.s32.totalorder %s294, %s297
      %p303 = scmp.eq.s32.totalorder %s22, 0
      %p304 = por %p302, %p303
      %p305 = scmp.ne.s32.totalorder %s294, %s297
      %p306 = scmp.eq.s32.totalorder %s27, 1
      %p307 = por %p305, %p306
      %p308 = scmp.ne.s32.totalorder %s297, %s298
      %p309 = scmp.eq.s32.totalorder %s27, 0
      %p310 = por %p308, %p309
      %p311 = scmp.ne.s32.totalorder %s297, %s298
      %p312 = scmp.eq.s32.totalorder %s28, 1
      %p313 = por %p311, %p312
      %p315 = scmp.ne.s32.totalorder %s298, %s314
      %p316 = scmp.eq.s32.totalorder %s28, 0
      %p317 = por %p315, %p316
      %p318 = scmp.le.s32.totalorder 1, %s22
      %p319 = scmp.lt.s32.totalorder %s22, 3
      %p320 = pnand %p318, %p319
      %p321 = pneg %p320
      // Predicated region
      $region9: #{tpu_custom_call.1} parent=5 // pred_check
        _
      $region10: #{tpu_custom_call.1} parent=5 // pred_check_branch
        %323 = sbr.rel (%p320) target = $region12
      $region11: #{tpu_custom_call.1} parent=5 // pred_region
        %s324 = ssub.s32 %s22, 1
        // Predicated region
        $region13: #{tpu_custom_call.1} parent=11 // pred_check
          %p325 = pneg %p135
        $region14: #{tpu_custom_call.1} parent=11 // pred_check_branch
          %327 = sbr.rel (%p325) target = $region16
        $region15: #{tpu_custom_call.1} parent=11 // pred_region
          _
        $region16: #{tpu_custom_call.1} parent=11 // pred_fallthru
          _
        // Predicated region
        $region17: #{tpu_custom_call.1} parent=11 // pred_check
          %p328 = pneg %p156
        $region18: #{tpu_custom_call.1} parent=11 // pred_check_branch
          %330 = sbr.rel (%p328) target = $region20
        $region19: #{tpu_custom_call.1} parent=11 // pred_region
          _
        $region20: #{tpu_custom_call.1} parent=11 // pred_fallthru
          _
        // Predicated region
        $region21: #{tpu_custom_call.1} parent=11 // pred_check
          %p331 = pneg %p177
        $region22: #{tpu_custom_call.1} parent=11 // pred_check_branch
          %333 = sbr.rel (%p331) target = $region24
        $region23: #{tpu_custom_call.1} parent=11 // pred_region
          _
        $region24: #{tpu_custom_call.1} parent=11 // pred_fallthru
          _
        // Predicated region
        $region25: #{tpu_custom_call.1} parent=11 // pred_check
          %p334 = pneg %p198
        $region26: #{tpu_custom_call.1} parent=11 // pred_check_branch
          %336 = sbr.rel (%p334) target = $region28
        $region27: #{tpu_custom_call.1} parent=11 // pred_region
          _
        $region28: #{tpu_custom_call.1} parent=11 // pred_fallthru
          _
        // Predicated region
        $region29: #{tpu_custom_call.1} parent=11 // pred_check
          %p337 = pneg %p219
        $region30: #{tpu_custom_call.1} parent=11 // pred_check_branch
          %339 = sbr.rel (%p337) target = $region32
        $region31: #{tpu_custom_call.1} parent=11 // pred_region
          %341 = vsyncadd [#allocation7], 0
          %s342 = sshll.u32 %s7, 4
          %s343 = int_to_ptr.hbm [resolvable:$true] %s342
          %s344 = sshll.u32 [#allocation6], 4
          %s345 = int_to_ptr.vmem [resolvable:$true] %s344
          %350 = dma.hbm_to_vmem [thread:$0]  %s343, 512, %s345, [#allocation7], 128, 128, 8
        $region32: #{tpu_custom_call.1} parent=11 // pred_fallthru
          _
        // Predicated region
        $region33: #{tpu_custom_call.1} parent=11 // pred_check
          %p351 = pneg %p240
        $region34: #{tpu_custom_call.1} parent=11 // pred_check_branch
          %353 = sbr.rel (%p351) target = $region36
        $region35: #{tpu_custom_call.1} parent=11 // pred_region
          _
        $region36: #{tpu_custom_call.1} parent=11 // pred_fallthru
          _
        // Predicated region
        $region37: #{tpu_custom_call.1} parent=11 // pred_check
          %p354 = pneg %p261
        $region38: #{tpu_custom_call.1} parent=11 // pred_check_branch
          %356 = sbr.rel (%p354) target = $region40
        $region39: #{tpu_custom_call.1} parent=11 // pred_region
          %358 = vsyncadd [#allocation10], 0
          %s359 = sshll.u32 %s9, 4
          %s360 = int_to_ptr.hbm [resolvable:$true] %s359
          %s361 = sshll.u32 [#allocation9], 4
          %s362 = int_to_ptr.vmem [resolvable:$true] %s361
          %367 = dma.hbm_to_vmem [thread:$0]  %s360, 512, %s362, [#allocation10], 128, 128, 8
        $region40: #{tpu_custom_call.1} parent=11 // pred_fallthru
          _
        // Predicated region
        $region41: #{tpu_custom_call.1} parent=11 // pred_check
          %p368 = pneg %p282
        $region42: #{tpu_custom_call.1} parent=11 // pred_check_branch
          %370 = sbr.rel (%p368) target = $region44
        $region43: #{tpu_custom_call.1} parent=11 // pred_region
          _
        $region44: #{tpu_custom_call.1} parent=11 // pred_fallthru
          _
      $region12: #{tpu_custom_call.1} parent=5 // pred_fallthru
        _
      %p371 = scmp.lt.s32.totalorder %s22, 2
      // Predicated region
      $region45: #{tpu_custom_call.1} parent=5 // pred_check
        %p372 = pneg %p371
      $region46: #{tpu_custom_call.1} parent=5 // pred_check_branch
        %374 = sbr.rel (%p372) target = $region48
      $region47: #{tpu_custom_call.1} parent=5 // pred_region
        // Predicated region
        $region49: #{tpu_custom_call.1} parent=47 // pred_check
          %p375 = pneg %p56
        $region50: #{tpu_custom_call.1} parent=47 // pred_check_branch
          %377 = sbr.rel (%p375) target = $region52
        $region51: #{tpu_custom_call.1} parent=47 // pred_region
          %p378 = scmp.lt.s32.totalorder %s29, 1
          %s379 = scalar_select %p378, %s29, 1
          %p380 = scmp.lt.s32.totalorder %s30, 0
          %s381 = scalar_select %p380, %s30, 0
          %s382 = sadd.s32 %s381, %s379
          %s383 = smul.addr %s382, 8
          %s384 = scalar_lea.vmem %s0, %s383
        $region52: #{tpu_custom_call.1} parent=47 // pred_fallthru
          _
        // Predicated region
        $region53: #{tpu_custom_call.1} parent=47 // pred_check
          %p385 = pneg %p82
        $region54: #{tpu_custom_call.1} parent=47 // pred_check_branch
          %387 = sbr.rel (%p385) target = $region56
        $region55: #{tpu_custom_call.1} parent=47 // pred_region
          %p388 = scmp.lt.s32.totalorder %s29, 1
          %s389 = scalar_select %p388, %s29, 1
          %s390 = smul.addr %s389, 2
          %s391 = smul.addr %s390, 8
          %s392 = scalar_lea.vmem %s1, %s391
        $region56: #{tpu_custom_call.1} parent=47 // pred_fallthru
          _
        // Predicated region
        $region57: #{tpu_custom_call.1} parent=47 // pred_check
          %p393 = pneg %p108
        $region58: #{tpu_custom_call.1} parent=47 // pred_check_branch
          %395 = sbr.rel (%p393) target = $region60
        $region59: #{tpu_custom_call.1} parent=47 // pred_region
          %p396 = scmp.lt.s32.totalorder %s29, 1
          %s397 = scalar_select %p396, %s29, 1
          %s398 = smul.addr %s397, 2
          %s399 = smul.addr %s398, 8
          %s400 = scalar_lea.vmem %s2, %s399
        $region60: #{tpu_custom_call.1} parent=47 // pred_fallthru
          _
      $region48: #{tpu_custom_call.1} parent=5 // pred_fallthru
        _
      %p401 = scmp.le.s32.totalorder 1, %s22
      %p402 = scmp.lt.s32.totalorder %s22, 3
      %p403 = pnand %p401, %p402
      %p404 = pneg %p403
      // Predicated region
      $region61: #{tpu_custom_call.1} parent=5 // pred_check
        _
      $region62: #{tpu_custom_call.1} parent=5 // pred_check_branch
        %406 = sbr.rel (%p403) target = $region64
      $region63: #{tpu_custom_call.1} parent=5 // pred_region
        %s407 = ssub.s32 %s22, 1
        // Predicated region
        $region65: #{tpu_custom_call.1} parent=63 // pred_check
          %p408 = pneg %p219
        $region66: #{tpu_custom_call.1} parent=63 // pred_check_branch
          %410 = sbr.rel (%p408) target = $region68
        $region67: #{tpu_custom_call.1} parent=63 // pred_region
          %412 = dma.done [#allocation7], 512
        $region68: #{tpu_custom_call.1} parent=63 // pred_fallthru
          _
        // Predicated region
        $region69: #{tpu_custom_call.1} parent=63 // pred_check
          %p413 = pneg %p261
        $region70: #{tpu_custom_call.1} parent=63 // pred_check_branch
          %415 = sbr.rel (%p413) target = $region72
        $region71: #{tpu_custom_call.1} parent=63 // pred_region
          %417 = dma.done [#allocation10], 512
        $region72: #{tpu_custom_call.1} parent=63 // pred_fallthru
          _
        %p418 = scmp.lt.s32.totalorder %s31, 1
        %s419 = scalar_select %p418, %s31, 1
        %p420 = scmp.lt.s32.totalorder %s32, 0
        %s421 = scalar_select %p420, %s32, 0
        %s422 = sadd.s32 %s421, %s419
        %s423 = smul.addr %s422, 8
        %s424 = scalar_lea.vmem %s0, %s423
        %p425 = pneg %p62
        %p426 = pneg %p59
        %p427 = scmp.lt.s32.totalorder %s31, 1
        %s428 = scalar_select %p427, %s31, 1
        %s429 = smul.addr %s428, 2
        %s430 = smul.addr %s429, 8
        %s431 = scalar_lea.vmem %s1, %s430
        %p432 = pneg %p88
        %p433 = pneg %p85
        %p434 = scmp.lt.s32.totalorder %s31, 1
        %s435 = scalar_select %p434, %s31, 1
        %s436 = smul.addr %s435, 2
        %s437 = smul.addr %s436, 8
        %s438 = scalar_lea.vmem %s2, %s437
        %p439 = pneg %p114
        %p440 = pneg %p111
        %p441 = pneg %p135
        %p442 = pneg %p132
        %p443 = pneg %p156
        %p444 = pneg %p153
        %p445 = pneg %p177
        %p446 = pneg %p174
        %p447 = pneg %p198
        %p448 = pneg %p195
        %p449 = pneg %p219
        %p450 = pneg %p216
        %p451 = pneg %p240
        %p452 = pneg %p237
        %p453 = pneg %p261
        %p454 = pneg %p258
        %p455 = pneg %p282
        %p456 = pneg %p279
        %p457 = pneg %p310
        %p458 = pneg %p307
        %s459 = sand.u32 %s297, 1
        %s460 = scalar_lea.sflag [#allocation8], %s459
        %s461 = sand.u32 %s297, 1
        %s462 = smul.addr %s461, 8
        %s463 = scalar_lea.vmem [#allocation11], %s462
        %p464 = scmp.lt.s32.totalorder %s31, 1
        %s465 = scalar_select %p464, %s31, 1
        %p466 = scmp.lt.s32.totalorder %s32, 0
        %s467 = scalar_select %p466, %s32, 0
        %s468 = sadd.s32 %s467, %s465
        %s469 = smul.addr %s468, 8
        %s470 = scalar_lea.vmem %s0, %s469
        %p471 = scmp.lt.s32.totalorder %s31, 1
        %s472 = scalar_select %p471, %s31, 1
        %s473 = smul.addr %s472, 2
        %s474 = smul.addr %s473, 8
        %s475 = scalar_lea.vmem %s1, %s474
        %p476 = scmp.lt.s32.totalorder %s31, 1
        %s477 = scalar_select %p476, %s31, 1
        %s478 = smul.addr %s477, 2
        %s479 = smul.addr %s478, 8
        %s480 = scalar_lea.vmem %s2, %s479
        %p481 = scmp.eq.s32.totalorder %s32, 0
        // Predicated region
        $region73: #{tpu_custom_call.1} parent=63 // pred_check
          %p482 = pneg %p481
        $region74: #{tpu_custom_call.1} parent=63 // pred_check_branch
          %484 = sbr.rel (%p482) target = $region76
        $region75: #{tpu_custom_call.1} parent=63 // pred_region
          %v485 = vld [vmem:[%s475] sm:$0xff]
          %v486 = vld [vmem:[%s475 + $0x8] sm:$0xf]
          %v487 = vld [vmem:[%s5] sm:$0xff]
          %v488 = vld [vmem:[%s5 + $0x8] sm:$0xff]
          %v489 = vld [vmem:[%s5 + $0x10] sm:$0xff]
          %v490 = vld [vmem:[%s5 + $0x18] sm:$0xff]
          %v491 = vld [vmem:[%s6] sm:$0x1]
          %v493 = vperm.slane %v491, 0
          %vm495 = vcmask 261120
          %v497 = vsel %vm495, %v485, 0
          %v500 = vsel %vm495, %v486, 0
          %502 = vmatpush.msra.mxu0 0.0
          %503 = vmatpush.msra.mxu0 0.0
          %504 = vmatpush.msra.mxu0 0.0
          %505 = vmatpush.msra.mxu0 0.0
          %506 = vmatpush.msra.mxu0 0.0
          %507 = vmatpush.msra.mxu0 0.0
          %508 = vmatpush.msra.mxu0 0.0
          %509 = vmatpush.msra.mxu0 0.0
          %510 = vmatpush.msra.mxu0 0.0
          %511 = vmatpush.msra.mxu0 0.0
          %512 = vmatpush.msra.mxu0 0.0
          %513 = vmatpush.msra.mxu0 0.0
          %514 = vmatpush.msra.mxu0 %v490
          %515 = vmatpush.msra.mxu0 %v489
          %516 = vmatpush.msra.mxu0 %v488
          %517 = vmatpush.msra.mxu0 %v487
          %518 = vmatmul.f32.gmra.mxu0 %v497
          %v519 = vpop.f32.mrf.mxu0
          %v520 = vadd.f32 %v493, %v519
          %521 = vmatmul.f32.gmra.mxu0 %v500
          %v522 = vpop.f32.mrf.mxu0
          %v523 = vadd.f32 %v493, %v522
          %524 = vdwg.mxu0
          %525 = vst.msk [vmem:[#allocation3] sm:$0xff] %vm495, %v520
          %vm526 = vcmask 257024
          %527 = vst.msk [vmem:[#allocation3 + $0x8] sm:$0xf] %vm526, %v523
          %v528 = vld [vmem:[%s480] sm:$0xff]
          %v529 = vld [vmem:[%s480 + $0x8] sm:$0xf]
          %v530 = vld [vmem:[#allocation6] sm:$0xff]
          %v531 = vld [vmem:[#allocation6 + $0x8] sm:$0xff]
          %v532 = vld [vmem:[#allocation6 + $0x10] sm:$0xff]
          %v533 = vld [vmem:[#allocation6 + $0x18] sm:$0xff]
          %v534 = vld [vmem:[%s8] sm:$0x1]
          %v536 = vperm.slane %v534, 0
          %v539 = vsel %vm495, %v528, 0
          %v542 = vsel %vm495, %v529, 0
          %544 = vmatpush.msra.mxu0 0.0
          %545 = vmatpush.msra.mxu0 0.0
          %546 = vmatpush.msra.mxu0 0.0
          %547 = vmatpush.msra.mxu0 0.0
          %548 = vmatpush.msra.mxu0 0.0
          %549 = vmatpush.msra.mxu0 0.0
          %550 = vmatpush.msra.mxu0 0.0
          %551 = vmatpush.msra.mxu0 0.0
          %552 = vmatpush.msra.mxu0 0.0
          %553 = vmatpush.msra.mxu0 0.0
          %554 = vmatpush.msra.mxu0 0.0
          %555 = vmatpush.msra.mxu0 0.0
          %556 = vmatpush.msra.mxu0 %v533
          %557 = vmatpush.msra.mxu0 %v532
          %558 = vmatpush.msra.mxu0 %v531
          %559 = vmatpush.msra.mxu0 %v530
          %560 = vmatmul.f32.gmra.mxu0 %v539
          %v561 = vpop.f32.mrf.mxu0
          %v562 = vadd.f32 %v536, %v561
          %563 = vmatmul.f32.gmra.mxu0 %v542
          %v564 = vpop.f32.mrf.mxu0
          %v565 = vadd.f32 %v536, %v564
          %566 = vdwg.mxu0
          %567 = vst.msk [vmem:[#allocation4] sm:$0xff] %vm495, %v562
          %568 = vst.msk [vmem:[#allocation4 + $0x8] sm:$0xf] %vm526, %v565
        $region76: #{tpu_custom_call.1} parent=63 // pred_fallthru
          _
        %v569 = vld [vmem:[%s470] sm:$0xff]
        %v570 = vld [vmem:[%s3] sm:$0xff]
        %v571 = vld [vmem:[%s3 + $0x8] sm:$0xff]
        %v572 = vld [vmem:[%s3 + $0x10] sm:$0xff]
        %v573 = vld [vmem:[%s3 + $0x18] sm:$0xff]
        %v574 = vld [vmem:[%s4] sm:$0x1]
        %v576 = vperm.slane %v574, 0
        %vm578 = vcmask 261120
        %v580 = vsel %vm578, %v569, 0
        %582 = vmatpush.msra.mxu0 0.0
        %583 = vmatpush.msra.mxu0 0.0
        %584 = vmatpush.msra.mxu0 0.0
        %585 = vmatpush.msra.mxu0 0.0
        %586 = vmatpush.msra.mxu0 0.0
        %587 = vmatpush.msra.mxu0 0.0
        %588 = vmatpush.msra.mxu0 0.0
        %589 = vmatpush.msra.mxu0 0.0
        %590 = vmatpush.msra.mxu0 0.0
        %591 = vmatpush.msra.mxu0 0.0
        %592 = vmatpush.msra.mxu0 0.0
        %593 = vmatpush.msra.mxu0 0.0
        %594 = vmatpush.msra.mxu0 %v573
        %595 = vmatpush.msra.mxu0 %v572
        %596 = vmatpush.msra.mxu0 %v571
        %597 = vmatpush.msra.mxu0 %v570
        %598 = vmatmul.f32.gmra.mxu0 %v580
        %v599 = vpop.f32.mrf.mxu0
        %v600 = vadd.f32 %v576, %v599
        %601 = vdwg.mxu0
        %602 = vst.msk [vmem:[#allocation2] sm:$0xff] %vm578, %v600
        %v603 = vld [vmem:[#allocation2] sm:$0xff]
        %v604 = vld [vmem:[#allocation3] sm:$0xff]
        %v605 = vld [vmem:[#allocation3 + $0x8] sm:$0xf]
        %vm606 = vcmask 64512
        %v608 = vsel %vm606, %v603, 0
        %v611 = vsel %vm606, %v604, 0
        %v614 = vsel %vm606, %v605, 0
        %616 = vmatpush.xpose.msra.mxu0 0.0
        %617 = vmatpush.xpose.msra.mxu0 0.0
        %618 = vmatpush.xpose.msra.mxu0 0.0
        %619 = vmatpush.xpose.msra.mxu0 0.0
        %620 = vmatpush.xpose.msra.mxu0 0.0
        %621 = vmatpush.xpose.msra.mxu0 0.0
        %622 = vmatpush.xpose.msra.mxu0 0.0
        %623 = vmatpush.xpose.msra.mxu0 0.0
        %624 = vmatpush.xpose.msra.mxu0 0.0
        %625 = vmatpush.xpose.msra.mxu0 0.0
        %626 = vmatpush.xpose.msra.mxu0 0.0
        %627 = vmatpush.xpose.msra.mxu0 0.0
        %628 = vmatpush.xpose.msra.mxu0 0.0
        %629 = vmatpush.xpose.msra.mxu0 0.0
        %630 = vmatpush.xpose.msra.mxu0 %v614
        %631 = vmatpush.xpose.msra.mxu0 %v611
        %632 = vmatmul.f32.gmra.mxu0 %v608
        %v633 = vpop.f32.mrf.mxu0
        %v634 = vadd.f32 0.0, %v633
        %635 = vdwg.mxu0
        %vm636 = vcmask 97280
        %v637 = vsel %vm636, %v634, -inf
        %638 = vmax.xlane.f32.xlu0 %v637
        %v639 = vpop.xlane.xlu0 %638
        %v640 = vsub.f32 %v634, %v639
        %v641 = vmul.f32 %v640, 1.442695
        %v642 = vpow.pop %v641
        %v643 = vsel %vm636, %v642, 0.0
        %644 = vadd.xlane.f32.xlu0 %v643
        %v645 = vpop.xlane.xlu0 %644
        %v646 = vrcp.pop %v645
        %v647 = vmul.f32 %v645, %v646
        %v648 = vsub.f32 1.0, %v647
        %v649 = vmul.f32 %v646, %v648
        %v650 = vadd.f32 %v646, %v649
        %vm651 = vweird.f32 %v645
        %vm652 = vweird.f32 %v646
        %vm653 = vmor %vm651, %vm652
        %v654 = vsel %vm653, %v646, %v650
        %v655 = vand.u32 2147483647, %v645
        %vm656 = vcmp.eq.f32.partialorder %v655, 8.507059e+37
        %v657 = vand.u32 %v645, 2147483648
        %v658 = vor.u32 1.1754944e-38, %v657
        %v659 = vsel %vm656, %v658, %v654
        %v660 = vmul.f32 %v642, %v659
        %v661 = vld [vmem:[#allocation4] sm:$0xff]
        %v662 = vld [vmem:[#allocation4 + $0x8] sm:$0xf]
        %v664 = vsel %vm636, %v660, 0
        %vm666 = vcmask 1043456
        %v668 = vsel %vm666, %v662, 0
        %670 = vmatpush.msra.mxu0 0.0
        %671 = vmatpush.msra.mxu0 0.0
        %672 = vmatpush.msra.mxu0 0.0
        %673 = vmatpush.msra.mxu0 0.0
        %674 = vmatpush.msra.mxu0 0.0
        %675 = vmatpush.msra.mxu0 0.0
        %676 = vmatpush.msra.mxu0 0.0
        %677 = vmatpush.msra.mxu0 0.0
        %678 = vmatpush.msra.mxu0 0.0
        %679 = vmatpush.msra.mxu0 0.0
        %680 = vmatpush.msra.mxu0 0.0
        %681 = vmatpush.msra.mxu0 0.0
        %682 = vmatpush.msra.mxu0 0.0
        %683 = vmatpush.msra.mxu0 0.0
        %684 = vmatpush.msra.mxu0 %v668
        %685 = vmatpush.msra.mxu0 %v661
        %686 = vmatmul.f32.gmra.mxu0 %v664
        %v687 = vpop.f32.mrf.mxu0
        %v688 = vadd.f32 0.0, %v687
        %689 = vdwg.mxu0
        %690 = vst.msk [vmem:[#allocation5] sm:$0xff] %vm606, %v688
        %v691 = vld [vmem:[#allocation2] sm:$0xff]
        %v692 = vld [vmem:[#allocation3] sm:$0xff]
        %v693 = vld [vmem:[#allocation3 + $0x8] sm:$0xf]
        %695 = vrot.lane.b32.xlu0 %v691, 120
        %v696 = vpop.permute.xlu0 %695
        %699 = vrot.lane.b32.xlu0 %v692, 120
        %v700 = vpop.permute.xlu0 %699
        %701 = vrot.lane.b32.xlu0 %v693, 120
        %v702 = vpop.permute.xlu0 %701
        %v703 = vsel %vm606, %v696, 0
        %v705 = vsel %vm606, %v700, 0
        %v707 = vsel %vm606, %v702, 0
        %709 = vmatpush.xpose.msra.mxu0 0.0
        %710 = vmatpush.xpose.msra.mxu0 0.0
        %711 = vmatpush.xpose.msra.mxu0 0.0
        %712 = vmatpush.xpose.msra.mxu0 0.0
        %713 = vmatpush.xpose.msra.mxu0 0.0
        %714 = vmatpush.xpose.msra.mxu0 0.0
        %715 = vmatpush.xpose.msra.mxu0 0.0
        %716 = vmatpush.xpose.msra.mxu0 0.0
        %717 = vmatpush.xpose.msra.mxu0 0.0
        %718 = vmatpush.xpose.msra.mxu0 0.0
        %719 = vmatpush.xpose.msra.mxu0 0.0
        %720 = vmatpush.xpose.msra.mxu0 0.0
        %721 = vmatpush.xpose.msra.mxu0 0.0
        %722 = vmatpush.xpose.msra.mxu0 0.0
        %723 = vmatpush.xpose.msra.mxu0 %v707
        %724 = vmatpush.xpose.msra.mxu0 %v705
        %725 = vmatmul.f32.gmra.mxu0 %v703
        %v726 = vpop.f32.mrf.mxu0
        %v727 = vadd.f32 0.0, %v726
        %728 = vdwg.mxu0
        %v729 = vsel %vm636, %v727, -inf
        %730 = vmax.xlane.f32.xlu0 %v729
        %v731 = vpop.xlane.xlu0 %730
        %v732 = vsub.f32 %v727, %v731
        %v733 = vmul.f32 %v732, 1.442695
        %v734 = vpow.pop %v733
        %v735 = vsel %vm636, %v734, 0.0
        %736 = vadd.xlane.f32.xlu0 %v735
        %v737 = vpop.xlane.xlu0 %736
        %v738 = vrcp.pop %v737
        %v739 = vmul.f32 %v737, %v738
        %v740 = vsub.f32 1.0, %v739
        %v741 = vmul.f32 %v738, %v740
        %v742 = vadd.f32 %v738, %v741
        %vm743 = vweird.f32 %v737
        %vm744 = vweird.f32 %v738
        %vm745 = vmor %vm743, %vm744
        %v746 = vsel %vm745, %v738, %v742
        %v747 = vand.u32 2147483647, %v737
        %vm748 = vcmp.eq.f32.partialorder %v747, 8.507059e+37
        %v749 = vand.u32 %v737, 2147483648
        %v750 = vor.u32 1.1754944e-38, %v749
        %v751 = vsel %vm748, %v750, %v746
        %v752 = vmul.f32 %v734, %v751
        %v753 = vld [vmem:[#allocation4] sm:$0xff]
        %v754 = vld [vmem:[#allocation4 + $0x8] sm:$0xf]
        %757 = vrot.lane.b32.xlu0 %v753, 120
        %v758 = vpop.permute.xlu0 %757
        %759 = vrot.lane.b32.xlu0 %v754, 120
        %v760 = vpop.permute.xlu0 %759
        %v763 = vsel %vm636, %v752, 0
        %v765 = vsel %vm666, %v760, 0
        %767 = vmatpush.msra.mxu0 0.0
        %768 = vmatpush.msra.mxu0 0.0
        %769 = vmatpush.msra.mxu0 0.0
        %770 = vmatpush.msra.mxu0 0.0
        %771 = vmatpush.msra.mxu0 0.0
        %772 = vmatpush.msra.mxu0 0.0
        %773 = vmatpush.msra.mxu0 0.0
        %774 = vmatpush.msra.mxu0 0.0
        %775 = vmatpush.msra.mxu0 0.0
        %776 = vmatpush.msra.mxu0 0.0
        %777 = vmatpush.msra.mxu0 0.0
        %778 = vmatpush.msra.mxu0 0.0
        %779 = vmatpush.msra.mxu0 0.0
        %780 = vmatpush.msra.mxu0 0.0
        %781 = vmatpush.msra.mxu0 %v765
        %782 = vmatpush.msra.mxu0 %v758
        %783 = vmatmul.f32.gmra.mxu0 %v763
        %v784 = vpop.f32.mrf.mxu0
        %v785 = vadd.f32 0.0, %v784
        %786 = vdwg.mxu0
        %788 = vrot.lane.b32.xlu0 %v785, 8
        %v789 = vpop.permute.xlu0 %788
        %vm791 = vcmask 130112
        %792 = vst.msk [vmem:[#allocation5] sm:$0xff] %vm791, %v789
        %v793 = vld [vmem:[#allocation2] sm:$0xff]
        %v794 = vld [vmem:[#allocation3] sm:$0xff]
        %v795 = vld [vmem:[#allocation3 + $0x8] sm:$0xf]
        %797 = vrot.lane.b32.xlu0 %v793, 112
        %v798 = vpop.permute.xlu0 %797
        %801 = vrot.lane.b32.xlu0 %v794, 112
        %v802 = vpop.permute.xlu0 %801
        %803 = vrot.lane.b32.xlu0 %v795, 112
        %v804 = vpop.permute.xlu0 %803
        %v805 = vsel %vm606, %v798, 0
        %v807 = vsel %vm606, %v802, 0
        %v809 = vsel %vm606, %v804, 0
        %811 = vmatpush.xpose.msra.mxu0 0.0
        %812 = vmatpush.xpose.msra.mxu0 0.0
        %813 = vmatpush.xpose.msra.mxu0 0.0
        %814 = vmatpush.xpose.msra.mxu0 0.0
        %815 = vmatpush.xpose.msra.mxu0 0.0
        %816 = vmatpush.xpose.msra.mxu0 0.0
        %817 = vmatpush.xpose.msra.mxu0 0.0
        %818 = vmatpush.xpose.msra.mxu0 0.0
        %819 = vmatpush.xpose.msra.mxu0 0.0
        %820 = vmatpush.xpose.msra.mxu0 0.0
        %821 = vmatpush.xpose.msra.mxu0 0.0
        %822 = vmatpush.xpose.msra.mxu0 0.0
        %823 = vmatpush.xpose.msra.mxu0 0.0
        %824 = vmatpush.xpose.msra.mxu0 0.0
        %825 = vmatpush.xpose.msra.mxu0 %v809
        %826 = vmatpush.xpose.msra.mxu0 %v807
        %827 = vmatmul.f32.gmra.mxu0 %v805
        %v828 = vpop.f32.mrf.mxu0
        %v829 = vadd.f32 0.0, %v828
        %830 = vdwg.mxu0
        %v831 = vsel %vm636, %v829, -inf
        %832 = vmax.xlane.f32.xlu0 %v831
        %v833 = vpop.xlane.xlu0 %832
        %v834 = vsub.f32 %v829, %v833
        %v835 = vmul.f32 %v834, 1.442695
        %v836 = vpow.pop %v835
        %v837 = vsel %vm636, %v836, 0.0
        %838 = vadd.xlane.f32.xlu0 %v837
        %v839 = vpop.xlane.xlu0 %838
        %v840 = vrcp.pop %v839
        %v841 = vmul.f32 %v839, %v840
        %v842 = vsub.f32 1.0, %v841
        %v843 = vmul.f32 %v840, %v842
        %v844 = vadd.f32 %v840, %v843
        %vm845 = vweird.f32 %v839
        %vm846 = vweird.f32 %v840
        %vm847 = vmor %vm845, %vm846
        %v848 = vsel %vm847, %v840, %v844
        %v849 = vand.u32 2147483647, %v839
        %vm850 = vcmp.eq.f32.partialorder %v849, 8.507059e+37
        %v851 = vand.u32 %v839, 2147483648
        %v852 = vor.u32 1.1754944e-38, %v851
        %v853 = vsel %vm850, %v852, %v848
        %v854 = vmul.f32 %v836, %v853
        %v855 = vld [vmem:[#allocation4] sm:$0xff]
        %v856 = vld [vmem:[#allocation4 + $0x8] sm:$0xf]
        %859 = vrot.lane.b32.xlu0 %v855, 112
        %v860 = vpop.permute.xlu0 %859
        %861 = vrot.lane.b32.xlu0 %v856, 112
        %v862 = vpop.permute.xlu0 %861
        %v865 = vsel %vm636, %v854, 0
        %v867 = vsel %vm666, %v862, 0
        %869 = vmatpush.msra.mxu0 0.0
        %870 = vmatpush.msra.mxu0 0.0
        %871 = vmatpush.msra.mxu0 0.0
        %872 = vmatpush.msra.mxu0 0.0
        %873 = vmatpush.msra.mxu0 0.0
        %874 = vmatpush.msra.mxu0 0.0
        %875 = vmatpush.msra.mxu0 0.0
        %876 = vmatpush.msra.mxu0 0.0
        %877 = vmatpush.msra.mxu0 0.0
        %878 = vmatpush.msra.mxu0 0.0
        %879 = vmatpush.msra.mxu0 0.0
        %880 = vmatpush.msra.mxu0 0.0
        %881 = vmatpush.msra.mxu0 0.0
        %882 = vmatpush.msra.mxu0 0.0
        %883 = vmatpush.msra.mxu0 %v867
        %884 = vmatpush.msra.mxu0 %v860
        %885 = vmatmul.f32.gmra.mxu0 %v865
        %v886 = vpop.f32.mrf.mxu0
        %v887 = vadd.f32 0.0, %v886
        %888 = vdwg.mxu0
        %890 = vrot.lane.b32.xlu0 %v887, 16
        %v891 = vpop.permute.xlu0 %890
        %vm893 = vcmask 195712
        %894 = vst.msk [vmem:[#allocation5] sm:$0xff] %vm893, %v891
        %v895 = vld [vmem:[#allocation2] sm:$0xff]
        %v896 = vld [vmem:[#allocation3] sm:$0xff]
        %v897 = vld [vmem:[#allocation3 + $0x8] sm:$0xf]
        %899 = vrot.lane.b32.xlu0 %v895, 104
        %v900 = vpop.permute.xlu0 %899
        %903 = vrot.lane.b32.xlu0 %v896, 104
        %v904 = vpop.permute.xlu0 %903
        %905 = vrot.lane.b32.xlu0 %v897, 104
        %v906 = vpop.permute.xlu0 %905
        %v907 = vsel %vm606, %v900, 0
        %v909 = vsel %vm606, %v904, 0
        %v911 = vsel %vm606, %v906, 0
        %913 = vmatpush.xpose.msra.mxu0 0.0
        %914 = vmatpush.xpose.msra.mxu0 0.0
        %915 = vmatpush.xpose.msra.mxu0 0.0
        %916 = vmatpush.xpose.msra.mxu0 0.0
        %917 = vmatpush.xpose.msra.mxu0 0.0
        %918 = vmatpush.xpose.msra.mxu0 0.0
        %919 = vmatpush.xpose.msra.mxu0 0.0
        %920 = vmatpush.xpose.msra.mxu0 0.0
        %921 = vmatpush.xpose.msra.mxu0 0.0
        %922 = vmatpush.xpose.msra.mxu0 0.0
        %923 = vmatpush.xpose.msra.mxu0 0.0
        %924 = vmatpush.xpose.msra.mxu0 0.0
        %925 = vmatpush.xpose.msra.mxu0 0.0
        %926 = vmatpush.xpose.msra.mxu0 0.0
        %927 = vmatpush.xpose.msra.mxu0 %v911
        %928 = vmatpush.xpose.msra.mxu0 %v909
        %929 = vmatmul.f32.gmra.mxu0 %v907
        %v930 = vpop.f32.mrf.mxu0
        %v931 = vadd.f32 0.0, %v930
        %932 = vdwg.mxu0
        %v933 = vsel %vm636, %v931, -inf
        %934 = vmax.xlane.f32.xlu0 %v933
        %v935 = vpop.xlane.xlu0 %934
        %v936 = vsub.f32 %v931, %v935
        %v937 = vmul.f32 %v936, 1.442695
        %v938 = vpow.pop %v937
        %v939 = vsel %vm636, %v938, 0.0
        %940 = vadd.xlane.f32.xlu0 %v939
        %v941 = vpop.xlane.xlu0 %940
        %v942 = vrcp.pop %v941
        %v943 = vmul.f32 %v941, %v942
        %v944 = vsub.f32 1.0, %v943
        %v945 = vmul.f32 %v942, %v944
        %v946 = vadd.f32 %v942, %v945
        %vm947 = vweird.f32 %v941
        %vm948 = vweird.f32 %v942
        %vm949 = vmor %vm947, %vm948
        %v950 = vsel %vm949, %v942, %v946
        %v951 = vand.u32 2147483647, %v941
        %vm952 = vcmp.eq.f32.partialorder %v951, 8.507059e+37
        %v953 = vand.u32 %v941, 2147483648
        %v954 = vor.u32 1.1754944e-38, %v953
        %v955 = vsel %vm952, %v954, %v950
        %v956 = vmul.f32 %v938, %v955
        %v957 = vld [vmem:[#allocation4] sm:$0xff]
        %v958 = vld [vmem:[#allocation4 + $0x8] sm:$0xf]
        %961 = vrot.lane.b32.xlu0 %v957, 104
        %v962 = vpop.permute.xlu0 %961
        %963 = vrot.lane.b32.xlu0 %v958, 104
        %v964 = vpop.permute.xlu0 %963
        %v967 = vsel %vm636, %v956, 0
        %v969 = vsel %vm666, %v964, 0
        %971 = vmatpush.msra.mxu0 0.0
        %972 = vmatpush.msra.mxu0 0.0
        %973 = vmatpush.msra.mxu0 0.0
        %974 = vmatpush.msra.mxu0 0.0
        %975 = vmatpush.msra.mxu0 0.0
        %976 = vmatpush.msra.mxu0 0.0
        %977 = vmatpush.msra.mxu0 0.0
        %978 = vmatpush.msra.mxu0 0.0
        %979 = vmatpush.msra.mxu0 0.0
        %980 = vmatpush.msra.mxu0 0.0
        %981 = vmatpush.msra.mxu0 0.0
        %982 = vmatpush.msra.mxu0 0.0
        %983 = vmatpush.msra.mxu0 0.0
        %984 = vmatpush.msra.mxu0 0.0
        %985 = vmatpush.msra.mxu0 %v969
        %986 = vmatpush.msra.mxu0 %v962
        %987 = vmatmul.f32.gmra.mxu0 %v967
        %v988 = vpop.f32.mrf.mxu0
        %v989 = vadd.f32 0.0, %v988
        %990 = vdwg.mxu0
        %992 = vrot.lane.b32.xlu0 %v989, 24
        %v993 = vpop.permute.xlu0 %992
        %vm995 = vcmask 261312
        %996 = vst.msk [vmem:[#allocation5] sm:$0xff] %vm995, %v993
        %v997 = vld [vmem:[#allocation5] sm:$0xff]
        %v998 = vld [vmem:[#allocation9] sm:$0xff]
        %v999 = vld [vmem:[#allocation9 + $0x8] sm:$0xff]
        %v1000 = vld [vmem:[#allocation9 + $0x10] sm:$0xff]
        %v1001 = vld [vmem:[#allocation9 + $0x18] sm:$0xff]
        %v1002 = vld [vmem:[%s10] sm:$0x1]
        %v1004 = vperm.slane %v1002, 0
        %v1007 = vsel %vm578, %v997, 0
        %1009 = vmatpush.msra.mxu0 0.0
        %1010 = vmatpush.msra.mxu0 0.0
        %1011 = vmatpush.msra.mxu0 0.0
        %1012 = vmatpush.msra.mxu0 0.0
        %1013 = vmatpush.msra.mxu0 0.0
        %1014 = vmatpush.msra.mxu0 0.0
        %1015 = vmatpush.msra.mxu0 0.0
        %1016 = vmatpush.msra.mxu0 0.0
        %1017 = vmatpush.msra.mxu0 0.0
        %1018 = vmatpush.msra.mxu0 0.0
        %1019 = vmatpush.msra.mxu0 0.0
        %1020 = vmatpush.msra.mxu0 0.0
        %1021 = vmatpush.msra.mxu0 %v1001
        %1022 = vmatpush.msra.mxu0 %v1000
        %1023 = vmatpush.msra.mxu0 %v999
        %1024 = vmatpush.msra.mxu0 %v998
        %1025 = vmatmul.f32.gmra.mxu0 %v1007
        %v1026 = vpop.f32.mrf.mxu0
        %v1027 = vadd.f32 %v1004, %v1026
        %1028 = vdwg.mxu0
        %1029 = vst.msk [vmem:[%s463] sm:$0xff] %vm578, %v1027
        %s1030 = sand.u32 %s297, 1
        %s1031 = scalar_lea.sflag [#allocation8], %s1030
        %s1032 = sand.u32 %s297, 1
        %s1033 = smul.addr %s1032, 8
        %s1034 = scalar_lea.vmem [#allocation11], %s1033
        // Predicated region
        $region77: #{tpu_custom_call.1} parent=63 // pred_check
          %p1035 = pneg %p307
        $region78: #{tpu_custom_call.1} parent=63 // pred_check_branch
          %1037 = sbr.rel (%p1035) target = $region80
        $region79: #{tpu_custom_call.1} parent=63 // pred_region
          %1039 = vsyncadd %s1031, 0
          %s1040 = sadd.s32 %s32, %s31
          %s1041 = smul.addr %s1040, 8
          %s1042 = scalar_lea.hbm %s11, %s1041
          %s1044 = sshll.u32 %s1034, 4
          %s1045 = int_to_ptr.vmem [resolvable:$true] %s1044
          %s1046 = sshll.u32 %s1042, 4
          %s1047 = int_to_ptr.hbm [resolvable:$true] %s1046
          %1049 = dma.vmem_to_hbm [thread:$0]  %s1045, 128, %s1047, %s1031
        $region80: #{tpu_custom_call.1} parent=63 // pred_fallthru
          _
      $region64: #{tpu_custom_call.1} parent=5 // pred_fallthru
        _
      %p1050 = scmp.le.s32.totalorder 2, %s22
      // Predicated region
      $region81: #{tpu_custom_call.1} parent=5 // pred_check
        %p1051 = pneg %p1050
      $region82: #{tpu_custom_call.1} parent=5 // pred_check_branch
        %1053 = sbr.rel (%p1051) target = $region84
      $region83: #{tpu_custom_call.1} parent=5 // pred_region
        %s1054 = ssub.s32 %s22, 2
        // Predicated region
        $region85: #{tpu_custom_call.1} parent=83 // pred_check
          %p1055 = pneg %p313
        $region86: #{tpu_custom_call.1} parent=83 // pred_check_branch
          %1057 = sbr.rel (%p1055) target = $region88
        $region87: #{tpu_custom_call.1} parent=83 // pred_region
          %s1058 = sand.u32 %s298, 1
          %s1059 = scalar_lea.sflag [#allocation8], %s1058
          %s1060 = sand.u32 %s298, 1
          %s1061 = smul.addr %s1060, 8
          %s1062 = scalar_lea.vmem [#allocation11], %s1061
          %1064 = dma.done %s1059, 128
        $region88: #{tpu_custom_call.1} parent=83 // pred_fallthru
          _
      $region84: #{tpu_custom_call.1} parent=5 // pred_fallthru
        _
    $region6: #{tpu_custom_call.1} parent=1 // loop_footer
      %s26 = sadd.s32 1, %s22
    $region7: #{tpu_custom_call.1} parent=1 // loop_footer_branch
      %21 = sbr.rel target = $region3
    $region8: #{tpu_custom_call.1} parent=1 // loop_exit
      _
    %1065 = vsyncpa [#allocation7], 1
    %s1066 = scalar_lea.sflag [#allocation7], 1
    %1067 = vsyncpa %s1066, 1
    %1068 = vsyncpa [#allocation10], 1
    %1069 = vsyncpa [#allocation8], 1
    %s1070 = scalar_lea.sflag [#allocation8], 1
    %1071 = vsyncpa %s1070, 1

</llo_original>
